<compile_context>
chip_gen: v7x
topology: tpu7x:2x2x1
jax: 0.10.0
libtpu: 0.0.40
codegen_flags: <defaults>
</compile_context>

<pallas_src>
import jax
import jax.numpy as jnp
from jax.experimental import pallas as pl
from jax.experimental.pallas import tpu as pltpu

_LANE = 128
_SUBLANE = 8


def _round_up(n, m):
    return ((n + m - 1) // m) * m


def _leaky_relu(x, slope=0.2):
    # 2 VALU ops (mul + max) instead of 3 (cmp + mul + select).
    return jnp.maximum(x, slope * x)


def mlp_d_kernel(x_ref,
                 w1_ref, b1_ref,
                 w2_ref, b2_ref,
                 w3_ref, b3_ref,
                 w4_ref, b4_ref,
                 o_ref):
    cdt = w1_ref.dtype                       # matmul-operand / hidden elementwise dtype
    x = x_ref[...].astype(cdt)               # in-kernel cast; x arrives unpadded f32

    # Linear 1 + LeakyReLU  (MXU accumulates in f32; hidden elementwise in cdt)
    h = jnp.dot(x, w1_ref[...], preferred_element_type=jnp.float32)
    h = _leaky_relu(h.astype(cdt) + b1_ref[...])

    # Linear 2 + LeakyReLU
    h = jnp.dot(h, w2_ref[...], preferred_element_type=jnp.float32)
    h = _leaky_relu(h.astype(cdt) + b2_ref[...])

    # Linear 3 + LeakyReLU
    h = jnp.dot(h, w3_ref[...], preferred_element_type=jnp.float32)
    h = _leaky_relu(h.astype(cdt) + b3_ref[...])

    # Linear 4 + Sigmoid (f32 bias + sigmoid, then store in output dtype).
    h = jnp.dot(h, w4_ref[...], preferred_element_type=jnp.float32) + b4_ref[...]
    o_ref[...] = jax.nn.sigmoid(h).astype(o_ref.dtype)


def prepare_params(params, compute_dtype=jnp.bfloat16):
    """Pad feature dims to multiples of 128 and cast ONCE (cache the result).

    params: list of (w, b) with w=(in, out), b=(1, out) so y = x @ w + b.
    Returns (ws, bs, noutput).  First layer's contraction dim is left at
    ninput (no lane pad of K needed); hidden K dims equal the previous layer's
    padded output dim automatically.
    """
    ws, bs = [], []
    prev_out_p = None
    for i, (w, b) in enumerate(params):
        din, dout = w.shape
        din_p = din if i == 0 else prev_out_p
        dout_p = _round_up(dout, _LANE)
        w_p = jnp.zeros((din_p, dout_p), compute_dtype)
        w_p = w_p.at[:din, :dout].set(w.astype(compute_dtype))
        # Hidden biases in compute dtype (bias add + LeakyReLU done in cdt);
        # final bias stays f32 (added to the f32 accumulator before sigmoid).
        b_dt = jnp.float32 if i == len(params) - 1 else compute_dtype
        b_p = jnp.zeros((1, dout_p), b_dt)
        b_p = b_p.at[:, :dout].set(b.reshape(1, -1).astype(b_dt))
        ws.append(w_p)
        bs.append(b_p)
        prev_out_p = dout_p
    noutput = params[-1][0].shape[1]
    return ws, bs, noutput


def _pick_tb(batch, tb_target):
    """Match the tile to the batch: avoid gross over-padding for large B and
    a single over-sized step for small B."""
    tb_target = max(_SUBLANE, int(tb_target))
    if batch <= tb_target:
        return _round_up(batch, _SUBLANE)
    n_steps = -(-batch // tb_target)
    return _round_up(-(-batch // n_steps), _SUBLANE)


def mlp_d_forward(x, prepared, *, tb=2048, out_dtype=None):
    """x: (B, ninput) float32.  prepared: output of prepare_params()."""
    ws, bs, noutput = prepared
    B, ninput = x.shape
    assert ninput == ws[0].shape[0], "x feature dim must match first weight"
    d_out_p = ws[-1].shape[1]
    if out_dtype is None:
        out_dtype = jnp.bfloat16 if ws[0].dtype == jnp.bfloat16 else jnp.float32

    tb = _pick_tb(B, tb)
    b_pad = _round_up(B, tb)
    # Only the batch dim is padded (f32, no lane pad, no cast in the wrapper).
    x_p = x if b_pad == B else jnp.pad(x, ((0, b_pad - B), (0, 0)))

    grid = (b_pad // tb,)

    def resident(a):  # constant index map -> stays VMEM-resident across steps
        return pl.BlockSpec(a.shape, lambda i: (0, 0))

    x_spec = pl.BlockSpec((tb, ninput), lambda i: (i, 0))       # full last dim
    out_spec = pl.BlockSpec((tb, d_out_p), lambda i: (i, 0))    # lane-dense slab

    flops = 2 * b_pad * sum(w.shape[0] * w.shape[1] for w in ws)
    bytes_accessed = (x_p.size * x_p.dtype.itemsize
                      + sum(a.size * a.dtype.itemsize for a in ws)
                      + sum(a.size * a.dtype.itemsize for a in bs)
                      + b_pad * d_out_p * jnp.dtype(out_dtype).itemsize)

    out_p = pl.pallas_call(
        mlp_d_kernel,
        out_shape=jax.ShapeDtypeStruct((b_pad, d_out_p), out_dtype),
        grid=grid,
        in_specs=[x_spec,
                  resident(ws[0]), resident(bs[0]),
                  resident(ws[1]), resident(bs[1]),
                  resident(ws[2]), resident(bs[2]),
                  resident(ws[3]), resident(bs[3])],
        out_specs=out_spec,
        compiler_params=pltpu.CompilerParams(
            dimension_semantics=("parallel",)),
        cost_estimate=pl.CostEstimate(
            flops=flops,
            transcendentals=b_pad * d_out_p,
            bytes_accessed=bytes_accessed),
    )(x_p, ws[0], bs[0], ws[1], bs[1], ws[2], bs[2], ws[3], bs[3])

    # Strip batch padding and the lane padding of the final layer.
    return out_p[:B, :noutput]


def init_params(key, ninput, layers, noutput):
    """Deterministic init matching the MLP_D layer structure.
    layers: string like '64-64-64' (same convention as the PyTorch module)."""
    layer_sizes = [ninput] + [int(s) for s in layers.split('-')]
    dims = list(zip(layer_sizes[:-1], layer_sizes[1:])) + [(layer_sizes[-1], noutput)]
    params = []
    for (fan_in, fan_out) in dims:
        key, kw, kb = jax.random.split(key, 3)
        bound = 1.0 / (fan_in ** 0.5)           # nn.Linear default init range
        w = jax.random.uniform(kw, (fan_in, fan_out), jnp.float32, -bound, bound)
        b = jax.random.uniform(kb, (1, fan_out), jnp.float32, -bound, bound)
        params.append((w, b))
    return params


def mlp_d_reference(x, params):
    """Pure-JAX f32 reference for correctness checking."""
    h = x
    for i, (w, b) in enumerate(params):
        h = h @ w + b
        if i < len(params) - 1:
            h = jnp.where(h > 0, h, 0.2 * h)
        else:
            h = jax.nn.sigmoid(h)
    return h


if __name__ == "__main__":
    key = jax.random.PRNGKey(0)
    kx, kp = jax.random.split(key)

    # Shapes consistent with the module: ninput=32, layers "64-64-64",
    # noutput=1.  B=37 exercises batch padding, unpadded-K first dot, and the
    # lane-dense padded output slab.
    B, ninput, noutput = 37, 32, 1
    layers = "64-64-64"

    x = jax.random.normal(kx, (B, ninput), dtype=jnp.float32)
    params = init_params(kp, ninput, layers, noutput)
    y_ref = mlp_d_reference(x, params)

    # f32-operand path with a tiny tile (multi-step grid): exact structural check.
    prepped_f32 = prepare_params(params, compute_dtype=jnp.float32)
    y32 = jax.block_until_ready(mlp_d_forward(x, prepped_f32, tb=16))
    assert y32.shape == (B, noutput)
    assert jnp.allclose(y32, y_ref, atol=1e-5, rtol=1e-5), "f32 mismatch vs reference"

    # bf16-operand / f32-accumulation path with the production tile size
    # (single step here since B < tb).  Output slab is bf16.
    prepped_bf16 = prepare_params(params, compute_dtype=jnp.bfloat16)
    ybf = jax.block_until_ready(mlp_d_forward(x, prepped_bf16, tb=2048))
    assert ybf.shape == (B, noutput)
    assert float(jnp.max(jnp.abs(ybf.astype(jnp.float32) - y_ref))) < 2e-2, \
        "bf16 mismatch vs reference"

    print("KERNEL_OK")
</pallas_src>

<mosaic_0001>
module attributes {stable_mosaic.version = 11 : i64} {
  func.func @mlp_d_kernel(%arg0: i32, %arg1: memref<16x32xf32, #tpu.memory_space<vmem>>, %arg2: memref<32x128xf32, #tpu.memory_space<vmem>>, %arg3: memref<1x128xf32, #tpu.memory_space<vmem>>, %arg4: memref<128x128xf32, #tpu.memory_space<vmem>>, %arg5: memref<1x128xf32, #tpu.memory_space<vmem>>, %arg6: memref<128x128xf32, #tpu.memory_space<vmem>>, %arg7: memref<1x128xf32, #tpu.memory_space<vmem>>, %arg8: memref<128x128xf32, #tpu.memory_space<vmem>>, %arg9: memref<1x128xf32, #tpu.memory_space<vmem>>, %arg10: memref<16x128xf32, #tpu.memory_space<vmem>>) attributes {dimension_semantics = [#tpu.dimension_semantics<parallel>], iteration_bounds = array<i64: 3>, scalar_prefetch = 0 : i64, scratch_operands = 0 : i64, tpu.core_type = #tpu.core_type<tc>, window_params = [{transform_indices = @transform_0, window_bounds = array<i64: 16, 32>}, {pipeline_mode = #tpu.pipeline_mode<synchronous>, transform_indices = @transform_1, window_bounds = array<i64: 32, 128>}, {pipeline_mode = #tpu.pipeline_mode<synchronous>, transform_indices = @transform_2, window_bounds = array<i64: 1, 128>}, {pipeline_mode = #tpu.pipeline_mode<synchronous>, transform_indices = @transform_3, window_bounds = array<i64: 128, 128>}, {pipeline_mode = #tpu.pipeline_mode<synchronous>, transform_indices = @transform_4, window_bounds = array<i64: 1, 128>}, {pipeline_mode = #tpu.pipeline_mode<synchronous>, transform_indices = @transform_5, window_bounds = array<i64: 128, 128>}, {pipeline_mode = #tpu.pipeline_mode<synchronous>, transform_indices = @transform_6, window_bounds = array<i64: 1, 128>}, {pipeline_mode = #tpu.pipeline_mode<synchronous>, transform_indices = @transform_7, window_bounds = array<i64: 128, 128>}, {pipeline_mode = #tpu.pipeline_mode<synchronous>, transform_indices = @transform_8, window_bounds = array<i64: 1, 128>}, {transform_indices = @transform_9, window_bounds = array<i64: 16, 128>}]} {
    %c0 = arith.constant 0 : index
    %c0_0 = arith.constant 0 : index
    %0 = vector.load %arg1[%c0, %c0_0] : memref<16x32xf32, #tpu.memory_space<vmem>>, vector<16x32xf32>
    %c0_1 = arith.constant 0 : index
    %c0_2 = arith.constant 0 : index
    %1 = vector.load %arg2[%c0_1, %c0_2] : memref<32x128xf32, #tpu.memory_space<vmem>>, vector<32x128xf32>
    %cst = arith.constant dense<0.000000e+00> : vector<16x128xf32>
    %2 = tpu.matmul %0, %1, %cst {dimension_numbers = #tpu.dot_dimension_numbers<[1], [0], [0], [1], [0, 0, 1, 1], [], []>} : vector<16x32xf32>, vector<32x128xf32>, vector<16x128xf32> -> vector<16x128xf32>
    %c0_3 = arith.constant 0 : index
    %c0_4 = arith.constant 0 : index
    %3 = vector.load %arg3[%c0_3, %c0_4] : memref<1x128xf32, #tpu.memory_space<vmem>>, vector<1x128xf32>
    %4 = vector.broadcast %3 : vector<1x128xf32> to vector<16x128xf32>
    %5 = arith.addf %2, %4 : vector<16x128xf32>
    %cst_5 = arith.constant 2.000000e-01 : f32
    %6 = vector.broadcast %cst_5 : f32 to vector<16x128xf32>
    %7 = arith.mulf %6, %5 : vector<16x128xf32>
    %8 = arith.maximumf %5, %7 : vector<16x128xf32>
    %c0_6 = arith.constant 0 : index
    %c0_7 = arith.constant 0 : index
    %9 = vector.load %arg4[%c0_6, %c0_7] : memref<128x128xf32, #tpu.memory_space<vmem>>, vector<128x128xf32>
    %cst_8 = arith.constant dense<0.000000e+00> : vector<16x128xf32>
    %10 = tpu.matmul %8, %9, %cst_8 {dimension_numbers = #tpu.dot_dimension_numbers<[1], [0], [0], [1], [0, 0, 1, 1], [], []>} : vector<16x128xf32>, vector<128x128xf32>, vector<16x128xf32> -> vector<16x128xf32>
    %c0_9 = arith.constant 0 : index
    %c0_10 = arith.constant 0 : index
    %11 = vector.load %arg5[%c0_9, %c0_10] : memref<1x128xf32, #tpu.memory_space<vmem>>, vector<1x128xf32>
    %12 = vector.broadcast %11 : vector<1x128xf32> to vector<16x128xf32>
    %13 = arith.addf %10, %12 : vector<16x128xf32>
    %cst_11 = arith.constant 2.000000e-01 : f32
    %14 = vector.broadcast %cst_11 : f32 to vector<16x128xf32>
    %15 = arith.mulf %14, %13 : vector<16x128xf32>
    %16 = arith.maximumf %13, %15 : vector<16x128xf32>
    %c0_12 = arith.constant 0 : index
    %c0_13 = arith.constant 0 : index
    %17 = vector.load %arg6[%c0_12, %c0_13] : memref<128x128xf32, #tpu.memory_space<vmem>>, vector<128x128xf32>
    %cst_14 = arith.constant dense<0.000000e+00> : vector<16x128xf32>
    %18 = tpu.matmul %16, %17, %cst_14 {dimension_numbers = #tpu.dot_dimension_numbers<[1], [0], [0], [1], [0, 0, 1, 1], [], []>} : vector<16x128xf32>, vector<128x128xf32>, vector<16x128xf32> -> vector<16x128xf32>
    %c0_15 = arith.constant 0 : index
    %c0_16 = arith.constant 0 : index
    %19 = vector.load %arg7[%c0_15, %c0_16] : memref<1x128xf32, #tpu.memory_space<vmem>>, vector<1x128xf32>
    %20 = vector.broadcast %19 : vector<1x128xf32> to vector<16x128xf32>
    %21 = arith.addf %18, %20 : vector<16x128xf32>
    %cst_17 = arith.constant 2.000000e-01 : f32
    %22 = vector.broadcast %cst_17 : f32 to vector<16x128xf32>
    %23 = arith.mulf %22, %21 : vector<16x128xf32>
    %24 = arith.maximumf %21, %23 : vector<16x128xf32>
    %c0_18 = arith.constant 0 : index
    %c0_19 = arith.constant 0 : index
    %25 = vector.load %arg8[%c0_18, %c0_19] : memref<128x128xf32, #tpu.memory_space<vmem>>, vector<128x128xf32>
    %cst_20 = arith.constant dense<0.000000e+00> : vector<16x128xf32>
    %26 = tpu.matmul %24, %25, %cst_20 {dimension_numbers = #tpu.dot_dimension_numbers<[1], [0], [0], [1], [0, 0, 1, 1], [], []>} : vector<16x128xf32>, vector<128x128xf32>, vector<16x128xf32> -> vector<16x128xf32>
    %c0_21 = arith.constant 0 : index
    %c0_22 = arith.constant 0 : index
    %27 = vector.load %arg9[%c0_21, %c0_22] : memref<1x128xf32, #tpu.memory_space<vmem>>, vector<1x128xf32>
    %28 = vector.broadcast %27 : vector<1x128xf32> to vector<16x128xf32>
    %29 = arith.addf %26, %28 : vector<16x128xf32>
    %30 = arith.negf %29 : vector<16x128xf32>
    %31 = math.exp %30 : vector<16x128xf32>
    %cst_23 = arith.constant 1.000000e+00 : f32
    %32 = vector.broadcast %cst_23 : f32 to vector<16x128xf32>
    %33 = arith.addf %32, %31 : vector<16x128xf32>
    %34 = arith.divf %32, %33 : vector<16x128xf32>
    %c0_24 = arith.constant 0 : index
    %c0_25 = arith.constant 0 : index
    %35 = vector.load %arg10[%c0_24, %c0_25] : memref<16x128xf32, #tpu.memory_space<vmem>>, vector<16x128xf32>
    tpu.vector_store %arg10[%c0_24, %c0_25], %34 {strides = array<i32>} : memref<16x128xf32, #tpu.memory_space<vmem>>, vector<16x128xf32>,
    return
  }
  func.func @transform_0(%arg0: i32) -> (i32, i32) {
    %c0_i32 = arith.constant 0 : i32
    %c0_i32_0 = arith.constant 0 : i32
    return %arg0, %c0_i32 : i32, i32
  }
  func.func @transform_1(%arg0: i32) -> (i32, i32) {
    %c0_i32 = arith.constant 0 : i32
    %c0_i32_0 = arith.constant 0 : i32
    %c0_i32_1 = arith.constant 0 : i32
    return %c0_i32, %c0_i32_0 : i32, i32
  }
  func.func @transform_2(%arg0: i32) -> (i32, i32) {
    %c0_i32 = arith.constant 0 : i32
    %c0_i32_0 = arith.constant 0 : i32
    %c0_i32_1 = arith.constant 0 : i32
    return %c0_i32, %c0_i32_0 : i32, i32
  }
  func.func @transform_3(%arg0: i32) -> (i32, i32) {
    %c0_i32 = arith.constant 0 : i32
    %c0_i32_0 = arith.constant 0 : i32
    %c0_i32_1 = arith.constant 0 : i32
    return %c0_i32, %c0_i32_0 : i32, i32
  }
  func.func @transform_4(%arg0: i32) -> (i32, i32) {
    %c0_i32 = arith.constant 0 : i32
    %c0_i32_0 = arith.constant 0 : i32
    %c0_i32_1 = arith.constant 0 : i32
    return %c0_i32, %c0_i32_0 : i32, i32
  }
  func.func @transform_5(%arg0: i32) -> (i32, i32) {
    %c0_i32 = arith.constant 0 : i32
    %c0_i32_0 = arith.constant 0 : i32
    %c0_i32_1 = arith.constant 0 : i32
    return %c0_i32, %c0_i32_0 : i32, i32
  }
  func.func @transform_6(%arg0: i32) -> (i32, i32) {
    %c0_i32 = arith.constant 0 : i32
    %c0_i32_0 = arith.constant 0 : i32
    %c0_i32_1 = arith.constant 0 : i32
    return %c0_i32, %c0_i32_0 : i32, i32
  }
  func.func @transform_7(%arg0: i32) -> (i32, i32) {
    %c0_i32 = arith.constant 0 : i32
    %c0_i32_0 = arith.constant 0 : i32
    %c0_i32_1 = arith.constant 0 : i32
    return %c0_i32, %c0_i32_0 : i32, i32
  }
  func.func @transform_8(%arg0: i32) -> (i32, i32) {
    %c0_i32 = arith.constant 0 : i32
    %c0_i32_0 = arith.constant 0 : i32
    %c0_i32_1 = arith.constant 0 : i32
    return %c0_i32, %c0_i32_0 : i32, i32
  }
  func.func @transform_9(%arg0: i32) -> (i32, i32) {
    %c0_i32 = arith.constant 0 : i32
    %c0_i32_0 = arith.constant 0 : i32
    return %arg0, %c0_i32 : i32, i32
  }
}

</mosaic_0001>

<llo_original>
// kernel: tpu_custom_call.1
$region0: #{tpu_custom_call.1}
  #allocation0 [shape = 'u32[]', space=smem, size = 0x4, offset = 0x4, fixed_abs, tag = 'smem constant byte address 0x4 - core index']
  #allocation1 [shape = 'u32[144,128]{1,0:T(1,128)}', space=vmem, size = 0x12000, scoped, tag = 'internal scratch']
  %s0 = inlined_call_operand.vmem [shape: f32[48,32], index: 0, kind: input, shape index: {}]
  %s1 = inlined_call_operand.vmem [shape: f32[32,128], index: 1, kind: input, shape index: {}]
  %s2 = inlined_call_operand.vmem [shape: f32[1,128], index: 2, kind: input, shape index: {}]
  %s3 = inlined_call_operand.hbm [shape: f32[128,128], index: 3, kind: input, shape index: {}]
  %s4 = inlined_call_operand.vmem [shape: f32[1,128], index: 4, kind: input, shape index: {}]
  %s5 = inlined_call_operand.hbm [shape: f32[128,128], index: 5, kind: input, shape index: {}]
  %s6 = inlined_call_operand.vmem [shape: f32[1,128], index: 6, kind: input, shape index: {}]
  %s7 = inlined_call_operand.hbm [shape: f32[128,128], index: 7, kind: input, shape index: {}]
  %s8 = inlined_call_operand.vmem [shape: f32[1,128], index: 8, kind: input, shape index: {}]
  %s9 = inlined_call_operand.hbm [shape: f32[48,128], index: 9, kind: output, shape index: {}]
  %s10 = sld [smem:[#allocation0]]
  $region81: #{tpu_custom_call.1} parent=0
    _
  %s12 = ssub.s32 1, %s10
  %s13 = scalar_select 0, %s12, %s10
  $region1: #{tpu_custom_call.1} parent=0
    #allocation2 [shape = 'u8[65536]{0}', space=vmem, size = 0x10000, scoped, tag = 'input window, operand 3, single buffered']
    #allocation3 [shape = 's32[2]{0}', space=sflag, size = 0x8, scoped, tag = 'scoped memory for tpu_custom_call.1']
    #allocation4 [shape = 's32[2]{0}', space=sflag, size = 0x8, scoped, tag = 'scoped memory for tpu_custom_call.1']
    #allocation5 [shape = 'u8[65536]{0}', space=vmem, size = 0x10000, scoped, tag = 'input window, operand 5, single buffered']
    #allocation6 [shape = 's32[1]{0}', space=sflag, size = 0x4, scoped, tag = 'scoped memory for tpu_custom_call.1']
    #allocation7 [shape = 'u8[65536]{0}', space=vmem, size = 0x10000, scoped, tag = 'input window, operand 7, single buffered']
    #allocation8 [shape = 'u8[16384]{0}', space=vmem, size = 0x4000, scoped, tag = 'output window, operand 0']
    %14 = vsyncpa [#allocation3], 0
    %15 = vsyncpa [#allocation6], 0
    %16 = vsyncpa [#allocation4], 0
    %s17 = scalar_lea.sflag [#allocation4], 1
    %18 = vsyncpa %s17, 0
    loop: start=0, step=1, limit=5
    $region2: #{tpu_custom_call.1} parent=1 // loop_pre_header
      _
    $region3: #{tpu_custom_call.1} parent=1 // loop_header
      %s20 = sphi 0, %s24
      %p21 = scmp.ge.s32.totalorder %s20, 5
      %s30 = sphi 0, %s32
      %s33 = sphi 0, %s30
      %s34 = sphi 0, %s33
      %s50 = sphi 0, %s34
      %s54 = sphi 0, %s54
      %s56 = sphi 0, %s54
      %s57 = sphi 0, %s56
      %s71 = sphi 0, %s57
      %s75 = sphi 0, %s75
      %s77 = sphi 0, %s75
      %s78 = sphi 0, %s77
      %s92 = sphi 0, %s78
      %s96 = sphi 0, %s96
      %s98 = sphi 0, %s96
      %s99 = sphi 0, %s98
      %s113 = sphi 0, %s99
      %s117 = sphi 0, %s117
      %s119 = sphi 0, %s117
      %s120 = sphi 0, %s119
      %s134 = sphi 0, %s120
      %s138 = sphi 0, %s138
      %s140 = sphi 0, %s138
      %s141 = sphi 0, %s140
      %s155 = sphi 0, %s141
      %s159 = sphi 0, %s159
      %s161 = sphi 0, %s159
      %s162 = sphi 0, %s161
      %s176 = sphi 0, %s162
      %s180 = sphi 0, %s180
      %s182 = sphi 0, %s180
      %s183 = sphi 0, %s182
      %s197 = sphi 0, %s183
      %s201 = sphi 0, %s201
      %s203 = sphi 0, %s201
      %s204 = sphi 0, %s203
      %s218 = sphi 0, %s204
      %s224 = sphi 0, %s226
      %s227 = sphi 0, %s224
      %s228 = sphi 0, %s227
      %s244 = sphi 0, %s228
    $region4: #{tpu_custom_call.1} parent=1 // loop_header_branch
      %23 = sbr.rel (%p21) target = $region8
    $region5: #{tpu_custom_call.1} parent=1 // loop_body
      %s25 = ssub.s32 %s20, 1
      %s26 = ssub.s32 %s20, 2
      %s27 = sadd.s32 %s20, 1
      %s28 = ssub.s32 %s20, %s27
      %p29 = scmp.eq.s32.totalorder %s28, 0
      %s31 = sadd.s32 %s30, 1
      %s32 = scalar_select %p29, %s30, %s31
      %p35 = pneg %p29
      %p36 = scmp.eq.s32.totalorder %s20, 2
      %p37 = por %p35, %p36
      %p38 = scmp.ne.s32.totalorder %s30, %s33
      %p39 = scmp.eq.s32.totalorder %s20, 0
      %p40 = por %p38, %p39
      %p41 = scmp.ne.s32.totalorder %s30, %s33
      %p42 = scmp.eq.s32.totalorder %s25, 2
      %p43 = por %p41, %p42
      %p44 = scmp.ne.s32.totalorder %s33, %s34
      %p45 = scmp.eq.s32.totalorder %s25, 0
      %p46 = por %p44, %p45
      %p47 = scmp.ne.s32.totalorder %s33, %s34
      %p48 = scmp.eq.s32.totalorder %s26, 2
      %p49 = por %p47, %p48
      %p51 = scmp.ne.s32.totalorder %s34, %s50
      %p52 = scmp.eq.s32.totalorder %s26, 0
      %p53 = por %p51, %p52
      %s55 = sadd.s32 %s54, 1
      %p58 = scmp.eq.s32.totalorder %s20, 2
      %p59 = scmp.ne.s32.totalorder %s54, %s56
      %p60 = scmp.eq.s32.totalorder %s20, 0
      %p61 = por %p59, %p60
      %p62 = scmp.ne.s32.totalorder %s54, %s56
      %p63 = scmp.eq.s32.totalorder %s25, 2
      %p64 = por %p62, %p63
      %p65 = scmp.ne.s32.totalorder %s56, %s57
      %p66 = scmp.eq.s32.totalorder %s25, 0
      %p67 = por %p65, %p66
      %p68 = scmp.ne.s32.totalorder %s56, %s57
      %p69 = scmp.eq.s32.totalorder %s26, 2
      %p70 = por %p68, %p69
      %p72 = scmp.ne.s32.totalorder %s57, %s71
      %p73 = scmp.eq.s32.totalorder %s26, 0
      %p74 = por %p72, %p73
      %s76 = sadd.s32 %s75, 1
      %p79 = scmp.eq.s32.totalorder %s20, 2
      %p80 = scmp.ne.s32.totalorder %s75, %s77
      %p81 = scmp.eq.s32.totalorder %s20, 0
      %p82 = por %p80, %p81
      %p83 = scmp.ne.s32.totalorder %s75, %s77
      %p84 = scmp.eq.s32.totalorder %s25, 2
      %p85 = por %p83, %p84
      %p86 = scmp.ne.s32.totalorder %s77, %s78
      %p87 = scmp.eq.s32.totalorder %s25, 0
      %p88 = por %p86, %p87
      %p89 = scmp.ne.s32.totalorder %s77, %s78
      %p90 = scmp.eq.s32.totalorder %s26, 2
      %p91 = por %p89, %p90
      %p93 = scmp.ne.s32.totalorder %s78, %s92
      %p94 = scmp.eq.s32.totalorder %s26, 0
      %p95 = por %p93, %p94
      %s97 = sadd.s32 %s96, 1
      %p100 = scmp.eq.s32.totalorder %s20, 2
      %p101 = scmp.ne.s32.totalorder %s96, %s98
      %p102 = scmp.eq.s32.totalorder %s20, 0
      %p103 = por %p101, %p102
      %p104 = scmp.ne.s32.totalorder %s96, %s98
      %p105 = scmp.eq.s32.totalorder %s25, 2
      %p106 = por %p104, %p105
      %p107 = scmp.ne.s32.totalorder %s98, %s99
      %p108 = scmp.eq.s32.totalorder %s25, 0
      %p109 = por %p107, %p108
      %p110 = scmp.ne.s32.totalorder %s98, %s99
      %p111 = scmp.eq.s32.totalorder %s26, 2
      %p112 = por %p110, %p111
      %p114 = scmp.ne.s32.totalorder %s99, %s113
      %p115 = scmp.eq.s32.totalorder %s26, 0
      %p116 = por %p114, %p115
      %s118 = sadd.s32 %s117, 1
      %p121 = scmp.eq.s32.totalorder %s20, 2
      %p122 = scmp.ne.s32.totalorder %s117, %s119
      %p123 = scmp.eq.s32.totalorder %s20, 0
      %p124 = por %p122, %p123
      %p125 = scmp.ne.s32.totalorder %s117, %s119
      %p126 = scmp.eq.s32.totalorder %s25, 2
      %p127 = por %p125, %p126
      %p128 = scmp.ne.s32.totalorder %s119, %s120
      %p129 = scmp.eq.s32.totalorder %s25, 0
      %p130 = por %p128, %p129
      %p131 = scmp.ne.s32.totalorder %s119, %s120
      %p132 = scmp.eq.s32.totalorder %s26, 2
      %p133 = por %p131, %p132
      %p135 = scmp.ne.s32.totalorder %s120, %s134
      %p136 = scmp.eq.s32.totalorder %s26, 0
      %p137 = por %p135, %p136
      %s139 = sadd.s32 %s138, 1
      %p142 = scmp.eq.s32.totalorder %s20, 2
      %p143 = scmp.ne.s32.totalorder %s138, %s140
      %p144 = scmp.eq.s32.totalorder %s20, 0
      %p145 = por %p143, %p144
      %p146 = scmp.ne.s32.totalorder %s138, %s140
      %p147 = scmp.eq.s32.totalorder %s25, 2
      %p148 = por %p146, %p147
      %p149 = scmp.ne.s32.totalorder %s140, %s141
      %p150 = scmp.eq.s32.totalorder %s25, 0
      %p151 = por %p149, %p150
      %p152 = scmp.ne.s32.totalorder %s140, %s141
      %p153 = scmp.eq.s32.totalorder %s26, 2
      %p154 = por %p152, %p153
      %p156 = scmp.ne.s32.totalorder %s141, %s155
      %p157 = scmp.eq.s32.totalorder %s26, 0
      %p158 = por %p156, %p157
      %s160 = sadd.s32 %s159, 1
      %p163 = scmp.eq.s32.totalorder %s20, 2
      %p164 = scmp.ne.s32.totalorder %s159, %s161
      %p165 = scmp.eq.s32.totalorder %s20, 0
      %p166 = por %p164, %p165
      %p167 = scmp.ne.s32.totalorder %s159, %s161
      %p168 = scmp.eq.s32.totalorder %s25, 2
      %p169 = por %p167, %p168
      %p170 = scmp.ne.s32.totalorder %s161, %s162
      %p171 = scmp.eq.s32.totalorder %s25, 0
      %p172 = por %p170, %p171
      %p173 = scmp.ne.s32.totalorder %s161, %s162
      %p174 = scmp.eq.s32.totalorder %s26, 2
      %p175 = por %p173, %p174
      %p177 = scmp.ne.s32.totalorder %s162, %s176
      %p178 = scmp.eq.s32.totalorder %s26, 0
      %p179 = por %p177, %p178
      %s181 = sadd.s32 %s180, 1
      %p184 = scmp.eq.s32.totalorder %s20, 2
      %p185 = scmp.ne.s32.totalorder %s180, %s182
      %p186 = scmp.eq.s32.totalorder %s20, 0
      %p187 = por %p185, %p186
      %p188 = scmp.ne.s32.totalorder %s180, %s182
      %p189 = scmp.eq.s32.totalorder %s25, 2
      %p190 = por %p188, %p189
      %p191 = scmp.ne.s32.totalorder %s182, %s183
      %p192 = scmp.eq.s32.totalorder %s25, 0
      %p193 = por %p191, %p192
      %p194 = scmp.ne.s32.totalorder %s182, %s183
      %p195 = scmp.eq.s32.totalorder %s26, 2
      %p196 = por %p194, %p195
      %p198 = scmp.ne.s32.totalorder %s183, %s197
      %p199 = scmp.eq.s32.totalorder %s26, 0
      %p200 = por %p198, %p199
      %s202 = sadd.s32 %s201, 1
      %p205 = scmp.eq.s32.totalorder %s20, 2
      %p206 = scmp.ne.s32.totalorder %s201, %s203
      %p207 = scmp.eq.s32.totalorder %s20, 0
      %p208 = por %p206, %p207
      %p209 = scmp.ne.s32.totalorder %s201, %s203
      %p210 = scmp.eq.s32.totalorder %s25, 2
      %p211 = por %p209, %p210
      %p212 = scmp.ne.s32.totalorder %s203, %s204
      %p213 = scmp.eq.s32.totalorder %s25, 0
      %p214 = por %p212, %p213
      %p215 = scmp.ne.s32.totalorder %s203, %s204
      %p216 = scmp.eq.s32.totalorder %s26, 2
      %p217 = por %p215, %p216
      %p219 = scmp.ne.s32.totalorder %s204, %s218
      %p220 = scmp.eq.s32.totalorder %s26, 0
      %p221 = por %p219, %p220
      %s222 = ssub.s32 %s20, %s27
      %p223 = scmp.eq.s32.totalorder %s222, 0
      %s225 = sadd.s32 %s224, 1
      %s226 = scalar_select %p223, %s224, %s225
      %p229 = pneg %p223
      %p230 = scmp.eq.s32.totalorder %s20, 2
      %p231 = por %p229, %p230
      %p232 = scmp.ne.s32.totalorder %s224, %s227
      %p233 = scmp.eq.s32.totalorder %s20, 0
      %p234 = por %p232, %p233
      %p235 = scmp.ne.s32.totalorder %s224, %s227
      %p236 = scmp.eq.s32.totalorder %s25, 2
      %p237 = por %p235, %p236
      %p238 = scmp.ne.s32.totalorder %s227, %s228
      %p239 = scmp.eq.s32.totalorder %s25, 0
      %p240 = por %p238, %p239
      %p241 = scmp.ne.s32.totalorder %s227, %s228
      %p242 = scmp.eq.s32.totalorder %s26, 2
      %p243 = por %p241, %p242
      %p245 = scmp.ne.s32.totalorder %s228, %s244
      %p246 = scmp.eq.s32.totalorder %s26, 0
      %p247 = por %p245, %p246
      %p248 = scmp.le.s32.totalorder 1, %s20
      %p249 = scmp.lt.s32.totalorder %s20, 4
      %p250 = pnand %p248, %p249
      %p251 = pneg %p250
      // Predicated region
      $region9: #{tpu_custom_call.1} parent=5 // pred_check
        _
      $region10: #{tpu_custom_call.1} parent=5 // pred_check_branch
        %253 = sbr.rel (%p250) target = $region12
      $region11: #{tpu_custom_call.1} parent=5 // pred_region
        %s254 = ssub.s32 %s20, 1
        // Predicated region
        $region13: #{tpu_custom_call.1} parent=11 // pred_check
          %p255 = pneg %p67
        $region14: #{tpu_custom_call.1} parent=11 // pred_check_branch
          %257 = sbr.rel (%p255) target = $region16
        $region15: #{tpu_custom_call.1} parent=11 // pred_region
          _
        $region16: #{tpu_custom_call.1} parent=11 // pred_fallthru
          _
        // Predicated region
        $region17: #{tpu_custom_call.1} parent=11 // pred_check
          %p258 = pneg %p88
        $region18: #{tpu_custom_call.1} parent=11 // pred_check_branch
          %260 = sbr.rel (%p258) target = $region20
        $region19: #{tpu_custom_call.1} parent=11 // pred_region
          _
        $region20: #{tpu_custom_call.1} parent=11 // pred_fallthru
          _
        // Predicated region
        $region21: #{tpu_custom_call.1} parent=11 // pred_check
          %p261 = pneg %p109
        $region22: #{tpu_custom_call.1} parent=11 // pred_check_branch
          %263 = sbr.rel (%p261) target = $region24
        $region23: #{tpu_custom_call.1} parent=11 // pred_region
          %s265 = ssub.s32 2048, 2048
          %266 = vsyncadd [#allocation3], %s265
          %s267 = sshll.u32 [#allocation2], 4
          %s268 = int_to_ptr.vmem [resolvable:$true] %s267
          %273 = dma.hbm_to_vmem [thread:$0]  %s3, 2048, %s268, [#allocation3], 128, 128, 8
        $region24: #{tpu_custom_call.1} parent=11 // pred_fallthru
          _
        // Predicated region
        $region25: #{tpu_custom_call.1} parent=11 // pred_check
          %p274 = pneg %p130
        $region26: #{tpu_custom_call.1} parent=11 // pred_check_branch
          %276 = sbr.rel (%p274) target = $region28
        $region27: #{tpu_custom_call.1} parent=11 // pred_region
          _
        $region28: #{tpu_custom_call.1} parent=11 // pred_fallthru
          _
        // Predicated region
        $region29: #{tpu_custom_call.1} parent=11 // pred_check
          %p277 = pneg %p151
        $region30: #{tpu_custom_call.1} parent=11 // pred_check_branch
          %279 = sbr.rel (%p277) target = $region32
        $region31: #{tpu_custom_call.1} parent=11 // pred_region
          %s281 = ssub.s32 2048, 2048
          %282 = vsyncadd [#allocation6], %s281
          %s283 = sshll.u32 [#allocation5], 4
          %s284 = int_to_ptr.vmem [resolvable:$true] %s283
          %289 = dma.hbm_to_vmem [thread:$0]  %s5, 2048, %s284, [#allocation6], 128, 128, 8
        $region32: #{tpu_custom_call.1} parent=11 // pred_fallthru
          _
        // Predicated region
        $region33: #{tpu_custom_call.1} parent=11 // pred_check
          %p290 = pneg %p172
        $region34: #{tpu_custom_call.1} parent=11 // pred_check_branch
          %292 = sbr.rel (%p290) target = $region36
        $region35: #{tpu_custom_call.1} parent=11 // pred_region
          _
        $region36: #{tpu_custom_call.1} parent=11 // pred_fallthru
          _
        // Predicated region
        $region37: #{tpu_custom_call.1} parent=11 // pred_check
          %p293 = pneg %p193
        $region38: #{tpu_custom_call.1} parent=11 // pred_check_branch
          %295 = sbr.rel (%p293) target = $region40
        $region39: #{tpu_custom_call.1} parent=11 // pred_region
          %s297 = ssub.s32 2048, 2048
          %298 = vsyncadd [#allocation6], %s297
          %s299 = sshll.u32 [#allocation7], 4
          %s300 = int_to_ptr.vmem [resolvable:$true] %s299
          %305 = dma.hbm_to_vmem [thread:$0]  %s7, 2048, %s300, [#allocation6], 128, 128, 8
        $region40: #{tpu_custom_call.1} parent=11 // pred_fallthru
          _
        // Predicated region
        $region41: #{tpu_custom_call.1} parent=11 // pred_check
          %p306 = pneg %p214
        $region42: #{tpu_custom_call.1} parent=11 // pred_check_branch
          %308 = sbr.rel (%p306) target = $region44
        $region43: #{tpu_custom_call.1} parent=11 // pred_region
          _
        $region44: #{tpu_custom_call.1} parent=11 // pred_fallthru
          _
      $region12: #{tpu_custom_call.1} parent=5 // pred_fallthru
        _
      %p309 = scmp.lt.s32.totalorder %s20, 3
      // Predicated region
      $region45: #{tpu_custom_call.1} parent=5 // pred_check
        %p310 = pneg %p309
      $region46: #{tpu_custom_call.1} parent=5 // pred_check_branch
        %312 = sbr.rel (%p310) target = $region48
      $region47: #{tpu_custom_call.1} parent=5 // pred_region
        // Predicated region
        $region49: #{tpu_custom_call.1} parent=47 // pred_check
          %p313 = pneg %p40
        $region50: #{tpu_custom_call.1} parent=47 // pred_check_branch
          %315 = sbr.rel (%p313) target = $region52
        $region51: #{tpu_custom_call.1} parent=47 // pred_region
          %s316 = smul.u32 2, %s20
          %p317 = scmp.lt.s32.totalorder %s316, 5
          %s318 = scalar_select %p317, %s316, 5
          %s319 = smul.addr %s318, 8
          %s320 = scalar_lea.vmem %s0, %s319
          %s321 = smul.u32 2, %s20
        $region52: #{tpu_custom_call.1} parent=47 // pred_fallthru
          _
      $region48: #{tpu_custom_call.1} parent=5 // pred_fallthru
        _
      %p322 = scmp.le.s32.totalorder 1, %s20
      %p323 = scmp.lt.s32.totalorder %s20, 4
      %p324 = pnand %p322, %p323
      %p325 = pneg %p324
      // Predicated region
      $region53: #{tpu_custom_call.1} parent=5 // pred_check
        _
      $region54: #{tpu_custom_call.1} parent=5 // pred_check_branch
        %327 = sbr.rel (%p324) target = $region56
      $region55: #{tpu_custom_call.1} parent=5 // pred_region
        %s328 = ssub.s32 %s20, 1
        // Predicated region
        $region57: #{tpu_custom_call.1} parent=55 // pred_check
          %p329 = pneg %p109
        $region58: #{tpu_custom_call.1} parent=55 // pred_check_branch
          %331 = sbr.rel (%p329) target = $region60
        $region59: #{tpu_custom_call.1} parent=55 // pred_region
          %332 = dma.done [#allocation3], 2048
        $region60: #{tpu_custom_call.1} parent=55 // pred_fallthru
          _
        // Predicated region
        $region61: #{tpu_custom_call.1} parent=55 // pred_check
          %p333 = pneg %p151
        $region62: #{tpu_custom_call.1} parent=55 // pred_check_branch
          %335 = sbr.rel (%p333) target = $region64
        $region63: #{tpu_custom_call.1} parent=55 // pred_region
          %336 = dma.done [#allocation6], 2048
        $region64: #{tpu_custom_call.1} parent=55 // pred_fallthru
          _
        // Predicated region
        $region65: #{tpu_custom_call.1} parent=55 // pred_check
          %p337 = pneg %p193
        $region66: #{tpu_custom_call.1} parent=55 // pred_check_branch
          %339 = sbr.rel (%p337) target = $region68
        $region67: #{tpu_custom_call.1} parent=55 // pred_region
          %340 = dma.done [#allocation6], 2048
        $region68: #{tpu_custom_call.1} parent=55 // pred_fallthru
          _
        %s341 = smul.u32 2, %s25
        %p342 = scmp.lt.s32.totalorder %s341, 5
        %s343 = scalar_select %p342, %s341, 5
        %s344 = smul.addr %s343, 8
        %s345 = scalar_lea.vmem %s0, %s344
        %p346 = pneg %p46
        %p347 = pneg %p43
        %p348 = pneg %p67
        %p349 = pneg %p64
        %p350 = pneg %p88
        %p351 = pneg %p85
        %p352 = pneg %p109
        %p353 = pneg %p106
        %p354 = pneg %p130
        %p355 = pneg %p127
        %p356 = pneg %p151
        %p357 = pneg %p148
        %p358 = pneg %p172
        %p359 = pneg %p169
        %p360 = pneg %p193
        %p361 = pneg %p190
        %p362 = pneg %p214
        %p363 = pneg %p211
        %p364 = pneg %p240
        %p365 = pneg %p237
        %s366 = sand.u32 %s227, 1
        %s367 = scalar_lea.sflag [#allocation4], %s366
        %s368 = sand.u32 %s227, 1
        %s369 = smul.addr %s368, 16
        %s370 = scalar_lea.vmem [#allocation8], %s369
        %s371 = smul.u32 2, %s25
        %p372 = scmp.lt.s32.totalorder %s371, 5
        %s373 = scalar_select %p372, %s371, 5
        %s374 = smul.addr %s373, 8
        %s375 = scalar_lea.vmem %s0, %s374
        %s376 = smul.u32 2, %s25
        %s377 = smul.u32 2, %s25
        %v378 = vld [vmem:[%s375] sm:$0xff]
        %v379 = vld [vmem:[%s375 + $0x8] sm:$0xff]
        %v380 = vld [vmem:[%s1] sm:$0xff]
        %v381 = vld [vmem:[%s1 + $0x8] sm:$0xff]
        %v382 = vld [vmem:[%s1 + $0x10] sm:$0xff]
        %v383 = vld [vmem:[%s1 + $0x18] sm:$0xff]
        %v384 = vld [vmem:[%s2] sm:$0x1]
        %v386 = vlaneseq
        %v387 = vshrl.u32 %v386, 7
        %v388 = vsub.s32 0, %v387
        %v389 = vrot.slane %v384, %v388
        %vm391 = vcmask 261120
        %v393 = vsel %vm391, %v378, 0
        %v396 = vsel %vm391, %v379, 0
        %398 = vmatprep.subr.mxu0 0.0
        %399 = vmatpush1.msra.mxu0 %v380
        %400 = vmatprep.subr.mxu0 0.0
        %401 = vmatpush1.msra.mxu0 %v381
        %402 = vmatprep.subr.mxu0 0.0
        %403 = vmatpush1.msra.mxu0 %v382
        %404 = vmatprep.subr.mxu0 0.0
        %405 = vmatpush1.msra.mxu0 %v383
        %406 = vmatprep.subr.mxu0 0.0
        %407 = vmatpush1.msra.mxu0 0.0
        %408 = vmatprep.subr.mxu0 0.0
        %409 = vmatpush1.msra.mxu0 0.0
        %410 = vmatprep.subr.mxu0 0.0
        %411 = vmatpush1.msra.mxu0 0.0
        %412 = vmatprep.subr.mxu0 0.0
        %413 = vmatpush1.msra.mxu0 0.0
        %414 = vmatprep.subr.mxu0 0.0
        %415 = vmatpush1.msra.mxu0 0.0
        %416 = vmatprep.subr.mxu0 0.0
        %417 = vmatpush1.msra.mxu0 0.0
        %418 = vmatprep.subr.mxu0 0.0
        %419 = vmatpush1.msra.mxu0 0.0
        %420 = vmatprep.subr.mxu0 0.0
        %421 = vmatpush1.msra.mxu0 0.0
        %422 = vmatprep.subr.mxu0 0.0
        %423 = vmatpush1.msra.mxu0 0.0
        %424 = vmatprep.subr.mxu0 0.0
        %425 = vmatpush1.msra.mxu0 0.0
        %426 = vmatprep.subr.mxu0 0.0
        %427 = vmatpush1.msra.mxu0 0.0
        %428 = vmatprep.subr.mxu0 0.0
        %429 = vmatpush1.msra.mxu0 0.0
        %430 = vmatprep.subr.mxu0 0.0
        %431 = vmatpush1.msra.mxu0 0.0
        %432 = vmatprep.subr.mxu0 0.0
        %433 = vmatpush1.msra.mxu0 0.0
        %434 = vmatprep.subr.mxu0 0.0
        %435 = vmatpush1.msra.mxu0 0.0
        %436 = vmatprep.subr.mxu0 0.0
        %437 = vmatpush1.msra.mxu0 0.0
        %438 = vmatprep.subr.mxu0 0.0
        %439 = vmatpush1.msra.mxu0 0.0
        %440 = vmatprep.subr.mxu0 0.0
        %441 = vmatpush1.msra.mxu0 0.0
        %442 = vmatprep.subr.mxu0 0.0
        %443 = vmatpush1.msra.mxu0 0.0
        %444 = vmatprep.subr.mxu0 0.0
        %445 = vmatpush1.msra.mxu0 0.0
        %446 = vmatprep.subr.mxu0 0.0
        %447 = vmatpush1.msra.mxu0 0.0
        %448 = vmatprep.subr.mxu0 0.0
        %449 = vmatpush1.msra.mxu0 0.0
        %450 = vmatprep.subr.mxu0 0.0
        %451 = vmatpush1.msra.mxu0 0.0
        %452 = vmatprep.subr.mxu0 0.0
        %453 = vmatpush1.msra.mxu0 0.0
        %454 = vmatprep.subr.mxu0 0.0
        %455 = vmatpush1.msra.mxu0 0.0
        %456 = vmatprep.subr.mxu0 0.0
        %457 = vmatpush1.msra.mxu0 0.0
        %458 = vmatprep.subr.mxu0 0.0
        %459 = vmatpush1.msra.mxu0 0.0
        %460 = vmatprep.subr.mxu0 0.0
        %461 = vmatpush1.msra.mxu0 0.0
        %462 = vmatprep.mubr.f32.mxu0 0.0
        %463 = vmatmul.mubr.f32.gmra.mrb[0].mxu0 %v393
        %v464 = vpop.f32.mrb[0].mxu0
        %v465 = vadd.f32 %v389, %v464
        %v466 = vpop.f32.mrb[0].mxu0
        %467 = vmatprep.mubr.f32.mxu0 0.0
        %468 = vmatmul.mubr.f32.gmra.mrb[0].mxu0 %v396
        %v469 = vpop.f32.mrb[0].mxu0
        %v470 = vadd.f32 %v389, %v469
        %v471 = vpop.f32.mrb[0].mxu0
        %472 = vdwg.mxu0
        %v473 = vmul.f32 %v465, 0.2
        %v474 = vmul.f32 %v470, 0.2
        %v475 = vmax.f32 %v465, %v473
        %v476 = vmax.f32 %v470, %v474
        %v477 = vld [vmem:[#allocation2] sm:$0xff]
        %v478 = vld [vmem:[#allocation2 + $0x8] sm:$0xff]
        %v479 = vld [vmem:[#allocation2 + $0x10] sm:$0xff]
        %v480 = vld [vmem:[#allocation2 + $0x18] sm:$0xff]
        %v481 = vld [vmem:[#allocation2 + $0x20] sm:$0xff]
        %v482 = vld [vmem:[#allocation2 + $0x28] sm:$0xff]
        %v483 = vld [vmem:[#allocation2 + $0x30] sm:$0xff]
        %v484 = vld [vmem:[#allocation2 + $0x38] sm:$0xff]
        %v485 = vld [vmem:[#allocation2 + $0x40] sm:$0xff]
        %v486 = vld [vmem:[#allocation2 + $0x48] sm:$0xff]
        %v487 = vld [vmem:[#allocation2 + $0x50] sm:$0xff]
        %v488 = vld [vmem:[#allocation2 + $0x58] sm:$0xff]
        %v489 = vld [vmem:[#allocation2 + $0x60] sm:$0xff]
        %v490 = vld [vmem:[#allocation2 + $0x68] sm:$0xff]
        %v491 = vld [vmem:[#allocation2 + $0x70] sm:$0xff]
        %v492 = vld [vmem:[#allocation2 + $0x78] sm:$0xff]
        %v493 = vld [vmem:[%s4] sm:$0x1]
        %v495 = vlaneseq
        %v496 = vshrl.u32 %v495, 7
        %v497 = vsub.s32 0, %v496
        %v498 = vrot.slane %v493, %v497
        %500 = vmatprep.subr.mxu0 0.0
        %501 = vmatpush1.msra.mxu0 %v477
        %502 = vmatprep.subr.mxu0 0.0
        %503 = vmatpush1.msra.mxu0 %v478
        %504 = vmatprep.subr.mxu0 0.0
        %505 = vmatpush1.msra.mxu0 %v479
        %506 = vmatprep.subr.mxu0 0.0
        %507 = vmatpush1.msra.mxu0 %v480
        %508 = vmatprep.subr.mxu0 0.0
        %509 = vmatpush1.msra.mxu0 %v481
        %510 = vmatprep.subr.mxu0 0.0
        %511 = vmatpush1.msra.mxu0 %v482
        %512 = vmatprep.subr.mxu0 0.0
        %513 = vmatpush1.msra.mxu0 %v483
        %514 = vmatprep.subr.mxu0 0.0
        %515 = vmatpush1.msra.mxu0 %v484
        %516 = vmatprep.subr.mxu0 0.0
        %517 = vmatpush1.msra.mxu0 %v485
        %518 = vmatprep.subr.mxu0 0.0
        %519 = vmatpush1.msra.mxu0 %v486
        %520 = vmatprep.subr.mxu0 0.0
        %521 = vmatpush1.msra.mxu0 %v487
        %522 = vmatprep.subr.mxu0 0.0
        %523 = vmatpush1.msra.mxu0 %v488
        %524 = vmatprep.subr.mxu0 0.0
        %525 = vmatpush1.msra.mxu0 %v489
        %526 = vmatprep.subr.mxu0 0.0
        %527 = vmatpush1.msra.mxu0 %v490
        %528 = vmatprep.subr.mxu0 0.0
        %529 = vmatpush1.msra.mxu0 %v491
        %530 = vmatprep.subr.mxu0 0.0
        %531 = vmatpush1.msra.mxu0 %v492
        %532 = vmatprep.subr.mxu0 0.0
        %533 = vmatpush1.msra.mxu0 0.0
        %534 = vmatprep.subr.mxu0 0.0
        %535 = vmatpush1.msra.mxu0 0.0
        %536 = vmatprep.subr.mxu0 0.0
        %537 = vmatpush1.msra.mxu0 0.0
        %538 = vmatprep.subr.mxu0 0.0
        %539 = vmatpush1.msra.mxu0 0.0
        %540 = vmatprep.subr.mxu0 0.0
        %541 = vmatpush1.msra.mxu0 0.0
        %542 = vmatprep.subr.mxu0 0.0
        %543 = vmatpush1.msra.mxu0 0.0
        %544 = vmatprep.subr.mxu0 0.0
        %545 = vmatpush1.msra.mxu0 0.0
        %546 = vmatprep.subr.mxu0 0.0
        %547 = vmatpush1.msra.mxu0 0.0
        %548 = vmatprep.subr.mxu0 0.0
        %549 = vmatpush1.msra.mxu0 0.0
        %550 = vmatprep.subr.mxu0 0.0
        %551 = vmatpush1.msra.mxu0 0.0
        %552 = vmatprep.subr.mxu0 0.0
        %553 = vmatpush1.msra.mxu0 0.0
        %554 = vmatprep.subr.mxu0 0.0
        %555 = vmatpush1.msra.mxu0 0.0
        %556 = vmatprep.subr.mxu0 0.0
        %557 = vmatpush1.msra.mxu0 0.0
        %558 = vmatprep.subr.mxu0 0.0
        %559 = vmatpush1.msra.mxu0 0.0
        %560 = vmatprep.subr.mxu0 0.0
        %561 = vmatpush1.msra.mxu0 0.0
        %562 = vmatprep.subr.mxu0 0.0
        %563 = vmatpush1.msra.mxu0 0.0
        %564 = vmatprep.mubr.f32.mxu0 0.0
        %565 = vmatmul.mubr.f32.gmra.mrb[0].mxu0 %v475
        %v566 = vpop.f32.mrb[0].mxu0
        %v567 = vadd.f32 %v498, %v566
        %v568 = vpop.f32.mrb[0].mxu0
        %569 = vmatprep.mubr.f32.mxu0 0.0
        %570 = vmatmul.mubr.f32.gmra.mrb[0].mxu0 %v476
        %v571 = vpop.f32.mrb[0].mxu0
        %v572 = vadd.f32 %v498, %v571
        %v573 = vpop.f32.mrb[0].mxu0
        %574 = vdwg.mxu0
        %v575 = vmul.f32 %v567, 0.2
        %v576 = vmul.f32 %v572, 0.2
        %v577 = vmax.f32 %v567, %v575
        %v578 = vmax.f32 %v572, %v576
        %v579 = vld [vmem:[#allocation5] sm:$0xff]
        %v580 = vld [vmem:[#allocation5 + $0x8] sm:$0xff]
        %v581 = vld [vmem:[#allocation5 + $0x10] sm:$0xff]
        %v582 = vld [vmem:[#allocation5 + $0x18] sm:$0xff]
        %v583 = vld [vmem:[#allocation5 + $0x20] sm:$0xff]
        %v584 = vld [vmem:[#allocation5 + $0x28] sm:$0xff]
        %v585 = vld [vmem:[#allocation5 + $0x30] sm:$0xff]
        %v586 = vld [vmem:[#allocation5 + $0x38] sm:$0xff]
        %v587 = vld [vmem:[#allocation5 + $0x40] sm:$0xff]
        %v588 = vld [vmem:[#allocation5 + $0x48] sm:$0xff]
        %v589 = vld [vmem:[#allocation5 + $0x50] sm:$0xff]
        %v590 = vld [vmem:[#allocation5 + $0x58] sm:$0xff]
        %v591 = vld [vmem:[#allocation5 + $0x60] sm:$0xff]
        %v592 = vld [vmem:[#allocation5 + $0x68] sm:$0xff]
        %v593 = vld [vmem:[#allocation5 + $0x70] sm:$0xff]
        %v594 = vld [vmem:[#allocation5 + $0x78] sm:$0xff]
        %v595 = vld [vmem:[%s6] sm:$0x1]
        %v597 = vlaneseq
        %v598 = vshrl.u32 %v597, 7
        %v599 = vsub.s32 0, %v598
        %v600 = vrot.slane %v595, %v599
        %602 = vmatprep.subr.mxu0 0.0
        %603 = vmatpush1.msra.mxu0 %v579
        %604 = vmatprep.subr.mxu0 0.0
        %605 = vmatpush1.msra.mxu0 %v580
        %606 = vmatprep.subr.mxu0 0.0
        %607 = vmatpush1.msra.mxu0 %v581
        %608 = vmatprep.subr.mxu0 0.0
        %609 = vmatpush1.msra.mxu0 %v582
        %610 = vmatprep.subr.mxu0 0.0
        %611 = vmatpush1.msra.mxu0 %v583
        %612 = vmatprep.subr.mxu0 0.0
        %613 = vmatpush1.msra.mxu0 %v584
        %614 = vmatprep.subr.mxu0 0.0
        %615 = vmatpush1.msra.mxu0 %v585
        %616 = vmatprep.subr.mxu0 0.0
        %617 = vmatpush1.msra.mxu0 %v586
        %618 = vmatprep.subr.mxu0 0.0
        %619 = vmatpush1.msra.mxu0 %v587
        %620 = vmatprep.subr.mxu0 0.0
        %621 = vmatpush1.msra.mxu0 %v588
        %622 = vmatprep.subr.mxu0 0.0
        %623 = vmatpush1.msra.mxu0 %v589
        %624 = vmatprep.subr.mxu0 0.0
        %625 = vmatpush1.msra.mxu0 %v590
        %626 = vmatprep.subr.mxu0 0.0
        %627 = vmatpush1.msra.mxu0 %v591
        %628 = vmatprep.subr.mxu0 0.0
        %629 = vmatpush1.msra.mxu0 %v592
        %630 = vmatprep.subr.mxu0 0.0
        %631 = vmatpush1.msra.mxu0 %v593
        %632 = vmatprep.subr.mxu0 0.0
        %633 = vmatpush1.msra.mxu0 %v594
        %634 = vmatprep.subr.mxu0 0.0
        %635 = vmatpush1.msra.mxu0 0.0
        %636 = vmatprep.subr.mxu0 0.0
        %637 = vmatpush1.msra.mxu0 0.0
        %638 = vmatprep.subr.mxu0 0.0
        %639 = vmatpush1.msra.mxu0 0.0
        %640 = vmatprep.subr.mxu0 0.0
        %641 = vmatpush1.msra.mxu0 0.0
        %642 = vmatprep.subr.mxu0 0.0
        %643 = vmatpush1.msra.mxu0 0.0
        %644 = vmatprep.subr.mxu0 0.0
        %645 = vmatpush1.msra.mxu0 0.0
        %646 = vmatprep.subr.mxu0 0.0
        %647 = vmatpush1.msra.mxu0 0.0
        %648 = vmatprep.subr.mxu0 0.0
        %649 = vmatpush1.msra.mxu0 0.0
        %650 = vmatprep.subr.mxu0 0.0
        %651 = vmatpush1.msra.mxu0 0.0
        %652 = vmatprep.subr.mxu0 0.0
        %653 = vmatpush1.msra.mxu0 0.0
        %654 = vmatprep.subr.mxu0 0.0
        %655 = vmatpush1.msra.mxu0 0.0
        %656 = vmatprep.subr.mxu0 0.0
        %657 = vmatpush1.msra.mxu0 0.0
        %658 = vmatprep.subr.mxu0 0.0
        %659 = vmatpush1.msra.mxu0 0.0
        %660 = vmatprep.subr.mxu0 0.0
        %661 = vmatpush1.msra.mxu0 0.0
        %662 = vmatprep.subr.mxu0 0.0
        %663 = vmatpush1.msra.mxu0 0.0
        %664 = vmatprep.subr.mxu0 0.0
        %665 = vmatpush1.msra.mxu0 0.0
        %666 = vmatprep.mubr.f32.mxu0 0.0
        %667 = vmatmul.mubr.f32.gmra.mrb[0].mxu0 %v577
        %v668 = vpop.f32.mrb[0].mxu0
        %v669 = vadd.f32 %v600, %v668
        %v670 = vpop.f32.mrb[0].mxu0
        %671 = vmatprep.mubr.f32.mxu0 0.0
        %672 = vmatmul.mubr.f32.gmra.mrb[0].mxu0 %v578
        %v673 = vpop.f32.mrb[0].mxu0
        %v674 = vadd.f32 %v600, %v673
        %v675 = vpop.f32.mrb[0].mxu0
        %676 = vdwg.mxu0
        %v677 = vmul.f32 %v669, 0.2
        %v678 = vmul.f32 %v674, 0.2
        %v679 = vmax.f32 %v669, %v677
        %v680 = vmax.f32 %v674, %v678
        %v681 = vld [vmem:[#allocation7] sm:$0xff]
        %v682 = vld [vmem:[#allocation7 + $0x8] sm:$0xff]
        %v683 = vld [vmem:[#allocation7 + $0x10] sm:$0xff]
        %v684 = vld [vmem:[#allocation7 + $0x18] sm:$0xff]
        %v685 = vld [vmem:[#allocation7 + $0x20] sm:$0xff]
        %v686 = vld [vmem:[#allocation7 + $0x28] sm:$0xff]
        %v687 = vld [vmem:[#allocation7 + $0x30] sm:$0xff]
        %v688 = vld [vmem:[#allocation7 + $0x38] sm:$0xff]
        %v689 = vld [vmem:[#allocation7 + $0x40] sm:$0xff]
        %v690 = vld [vmem:[#allocation7 + $0x48] sm:$0xff]
        %v691 = vld [vmem:[#allocation7 + $0x50] sm:$0xff]
        %v692 = vld [vmem:[#allocation7 + $0x58] sm:$0xff]
        %v693 = vld [vmem:[#allocation7 + $0x60] sm:$0xff]
        %v694 = vld [vmem:[#allocation7 + $0x68] sm:$0xff]
        %v695 = vld [vmem:[#allocation7 + $0x70] sm:$0xff]
        %v696 = vld [vmem:[#allocation7 + $0x78] sm:$0xff]
        %v697 = vld [vmem:[%s8] sm:$0x1]
        %v699 = vlaneseq
        %v700 = vshrl.u32 %v699, 7
        %v701 = vsub.s32 0, %v700
        %v702 = vrot.slane %v697, %v701
        %704 = vmatprep.subr.mxu0 0.0
        %705 = vmatpush1.msra.mxu0 %v681
        %706 = vmatprep.subr.mxu0 0.0
        %707 = vmatpush1.msra.mxu0 %v682
        %708 = vmatprep.subr.mxu0 0.0
        %709 = vmatpush1.msra.mxu0 %v683
        %710 = vmatprep.subr.mxu0 0.0
        %711 = vmatpush1.msra.mxu0 %v684
        %712 = vmatprep.subr.mxu0 0.0
        %713 = vmatpush1.msra.mxu0 %v685
        %714 = vmatprep.subr.mxu0 0.0
        %715 = vmatpush1.msra.mxu0 %v686
        %716 = vmatprep.subr.mxu0 0.0
        %717 = vmatpush1.msra.mxu0 %v687
        %718 = vmatprep.subr.mxu0 0.0
        %719 = vmatpush1.msra.mxu0 %v688
        %720 = vmatprep.subr.mxu0 0.0
        %721 = vmatpush1.msra.mxu0 %v689
        %722 = vmatprep.subr.mxu0 0.0
        %723 = vmatpush1.msra.mxu0 %v690
        %724 = vmatprep.subr.mxu0 0.0
        %725 = vmatpush1.msra.mxu0 %v691
        %726 = vmatprep.subr.mxu0 0.0
        %727 = vmatpush1.msra.mxu0 %v692
        %728 = vmatprep.subr.mxu0 0.0
        %729 = vmatpush1.msra.mxu0 %v693
        %730 = vmatprep.subr.mxu0 0.0
        %731 = vmatpush1.msra.mxu0 %v694
        %732 = vmatprep.subr.mxu0 0.0
        %733 = vmatpush1.msra.mxu0 %v695
        %734 = vmatprep.subr.mxu0 0.0
        %735 = vmatpush1.msra.mxu0 %v696
        %736 = vmatprep.subr.mxu0 0.0
        %737 = vmatpush1.msra.mxu0 0.0
        %738 = vmatprep.subr.mxu0 0.0
        %739 = vmatpush1.msra.mxu0 0.0
        %740 = vmatprep.subr.mxu0 0.0
        %741 = vmatpush1.msra.mxu0 0.0
        %742 = vmatprep.subr.mxu0 0.0
        %743 = vmatpush1.msra.mxu0 0.0
        %744 = vmatprep.subr.mxu0 0.0
        %745 = vmatpush1.msra.mxu0 0.0
        %746 = vmatprep.subr.mxu0 0.0
        %747 = vmatpush1.msra.mxu0 0.0
        %748 = vmatprep.subr.mxu0 0.0
        %749 = vmatpush1.msra.mxu0 0.0
        %750 = vmatprep.subr.mxu0 0.0
        %751 = vmatpush1.msra.mxu0 0.0
        %752 = vmatprep.subr.mxu0 0.0
        %753 = vmatpush1.msra.mxu0 0.0
        %754 = vmatprep.subr.mxu0 0.0
        %755 = vmatpush1.msra.mxu0 0.0
        %756 = vmatprep.subr.mxu0 0.0
        %757 = vmatpush1.msra.mxu0 0.0
        %758 = vmatprep.subr.mxu0 0.0
        %759 = vmatpush1.msra.mxu0 0.0
        %760 = vmatprep.subr.mxu0 0.0
        %761 = vmatpush1.msra.mxu0 0.0
        %762 = vmatprep.subr.mxu0 0.0
        %763 = vmatpush1.msra.mxu0 0.0
        %764 = vmatprep.subr.mxu0 0.0
        %765 = vmatpush1.msra.mxu0 0.0
        %766 = vmatprep.subr.mxu0 0.0
        %767 = vmatpush1.msra.mxu0 0.0
        %768 = vmatprep.mubr.f32.mxu0 0.0
        %769 = vmatmul.mubr.f32.gmra.mrb[0].mxu0 %v679
        %v770 = vpop.f32.mrb[0].mxu0
        %v771 = vadd.f32 %v702, %v770
        %v772 = vpop.f32.mrb[0].mxu0
        %773 = vmatprep.mubr.f32.mxu0 0.0
        %774 = vmatmul.mubr.f32.gmra.mrb[0].mxu0 %v680
        %v775 = vpop.f32.mrb[0].mxu0
        %v776 = vadd.f32 %v702, %v775
        %v777 = vpop.f32.mrb[0].mxu0
        %778 = vdwg.mxu0
        %v779 = vxor.u32 %v771, 2147483648
        %v780 = vxor.u32 %v776, 2147483648
        %v781 = vmul.f32 %v779, 1.442695
        %v782 = vpow.pop %v781
        %v783 = vmul.f32 %v780, 1.442695
        %v784 = vpow.pop %v783
        %v785 = vadd.f32 %v782, 1.0
        %v786 = vadd.f32 %v784, 1.0
        %v787 = vrcp.pop %v785
        %v788 = vmul.f32 1.0, %v787
        %v789 = vrcp.pop %v786
        %v790 = vmul.f32 1.0, %v789
        %791 = vst [vmem:[%s370] sm:$0xff] %v788
        %792 = vst [vmem:[%s370 + $0x8] sm:$0xff] %v790
        %s793 = sand.u32 %s227, 1
        %s794 = scalar_lea.sflag [#allocation4], %s793
        %s795 = sand.u32 %s227, 1
        %s796 = smul.addr %s795, 16
        %s797 = scalar_lea.vmem [#allocation8], %s796
        // Predicated region
        $region69: #{tpu_custom_call.1} parent=55 // pred_check
          %p798 = pneg %p237
        $region70: #{tpu_custom_call.1} parent=55 // pred_check_branch
          %800 = sbr.rel (%p798) target = $region72
        $region71: #{tpu_custom_call.1} parent=55 // pred_region
          %s801 = smul.u32 2, %s25
          %s803 = ssub.s32 256, 256
          %804 = vsyncadd %s794, %s803
          %s805 = smul.addr %s801, 128
          %s806 = scalar_lea.hbm %s9, %s805
          %s807 = sshll.u32 %s797, 4
          %s808 = int_to_ptr.vmem [resolvable:$true] %s807
          %813 = dma.vmem_to_hbm [thread:$0]  %s808, 256, %s806, %s794, 128, 128, 8
        $region72: #{tpu_custom_call.1} parent=55 // pred_fallthru
          _
      $region56: #{tpu_custom_call.1} parent=5 // pred_fallthru
        _
      %p814 = scmp.le.s32.totalorder 2, %s20
      // Predicated region
      $region73: #{tpu_custom_call.1} parent=5 // pred_check
        %p815 = pneg %p814
      $region74: #{tpu_custom_call.1} parent=5 // pred_check_branch
        %817 = sbr.rel (%p815) target = $region76
      $region75: #{tpu_custom_call.1} parent=5 // pred_region
        %s818 = ssub.s32 %s20, 2
        // Predicated region
        $region77: #{tpu_custom_call.1} parent=75 // pred_check
          %p819 = pneg %p243
        $region78: #{tpu_custom_call.1} parent=75 // pred_check_branch
          %821 = sbr.rel (%p819) target = $region80
        $region79: #{tpu_custom_call.1} parent=75 // pred_region
          %s822 = sand.u32 %s228, 1
          %s823 = scalar_lea.sflag [#allocation4], %s822
          %s824 = sand.u32 %s228, 1
          %s825 = smul.addr %s824, 16
          %s826 = scalar_lea.vmem [#allocation8], %s825
          %827 = dma.done %s823, 256
        $region80: #{tpu_custom_call.1} parent=75 // pred_fallthru
          _
      $region76: #{tpu_custom_call.1} parent=5 // pred_fallthru
        _
    $region6: #{tpu_custom_call.1} parent=1 // loop_footer
      %s24 = sadd.s32 1, %s20
    $region7: #{tpu_custom_call.1} parent=1 // loop_footer_branch
      %19 = sbr.rel target = $region3
    $region8: #{tpu_custom_call.1} parent=1 // loop_exit
      _
    %828 = vsyncpa [#allocation3], 1
    %s829 = scalar_lea.sflag [#allocation3], 1
    %830 = vsyncpa %s829, 1
    %831 = vsyncpa [#allocation6], 1
    %832 = vsyncpa [#allocation4], 1
    %s833 = scalar_lea.sflag [#allocation4], 1
    %834 = vsyncpa %s833, 1

</llo_original>
